<compile_context>
chip_gen: v7x
topology: tpu7x:2x2x1
jax: 0.10.0
libtpu: 0.0.40
codegen_flags: <defaults>
</compile_context>

<pallas_src>
import numpy as np
import jax
import jax.numpy as jnp
from jax.experimental import pallas as pl
from jax.experimental.pallas import tpu as pltpu


def _layernorm(h, gamma, beta, eps=1e-5):
    # One-pass variance (E[x^2] - mu^2): halves the cross-lane reductions.
    mu = jnp.mean(h, axis=-1, keepdims=True)
    var = jnp.maximum(jnp.mean(h * h, axis=-1, keepdims=True) - mu * mu, 0.0)
    return (h - mu) * jax.lax.rsqrt(var + eps) * gamma + beta


def iqn_kernel(x_ref, w1_ref, b1_ref, g1_ref, be1_ref,
               w2_ref, b2_ref, g2_ref, be2_ref,
               rf_ref, w3_ref, b3_ref, wv_ref, bv_ref,
               v_ref, h2_ref):
    num_chunks, cb, H1 = h2_ref.shape
    N = rf_ref.shape[0]
    bf16 = jnp.bfloat16

    # linear1 -> LayerNorm -> relu   (bf16 MXU operands, f32 accumulate/VPU math)
    h = jnp.dot(x_ref[...].astype(bf16), w1_ref[...],
                preferred_element_type=jnp.float32) + b1_ref[...]
    h = jnp.maximum(_layernorm(h, g1_ref[...], be1_ref[...]), 0.0)      # (TB, H0)

    # linear2 -> LayerNorm -> relu
    h = jnp.dot(h.astype(bf16), w2_ref[...],
                preferred_element_type=jnp.float32) + b2_ref[...]
    h = jnp.maximum(_layernorm(h, g2_ref[...], be2_ref[...]), 0.0)      # (TB, H1)

    # Park h2 in VMEM scratch with the chunk index as the leading (untiled)
    # axis so the chunk loop below can use cheap dynamic first-axis indexing.
    h2_ref[...] = h.reshape(num_chunks, cb, H1)

    rand_feat = rf_ref[...]                       # (N, H1)  f32 (hoisted in wrapper)
    w3 = w3_ref[...]                              # (H1, H1) bf16
    b3 = b3_ref[...]                              # (1, H1)  f32
    wv = wv_ref[...]                              # (1, H1)  bf16
    bv = bv_ref[0, 0]                             # scalar   f32 (SMEM)

    def chunk(c):
        h2_c = h2_ref[c]                                                 # (cb, H1)
        # Flat 2D expansion: row (b*N + n) = h2_c[b, :] * rand_feat[n, :]
        x3 = (h2_c[:, None, :] * rand_feat[None, :, :]).reshape(cb * N, H1)
        h3 = jnp.maximum(
            jnp.dot(x3.astype(bf16), w3,
                    preferred_element_type=jnp.float32) + b3, 0.0)       # (cb*N, H1)
        # V head on the MXU: wv (1, H1) contracted with h3 on H1 gives a
        # lane-major (1, cb*N) row -> lane-dense output store per chunk.
        v_row = jax.lax.dot_general(
            wv, h3.astype(bf16),
            dimension_numbers=(((1,), (1,)), ((), ())),
            preferred_element_type=jnp.float32)                          # (1, cb*N)
        v_ref[c] = v_row + bv

    if num_chunks == 1:
        chunk(0)
    else:
        def body(c, carry):
            chunk(c)
            return carry
        jax.lax.fori_loop(0, num_chunks, body, 0, unroll=num_chunks <= 4)


def _vmem_capacity_bytes():
    try:
        return int(pltpu.get_tpu_info().vmem_capacity_bytes)
    except Exception:
        return 64 << 20          # conservative: v7x per-TensorCore VMEM


def _pick_batch_tile(B, N, num_inputs, H0, H1, vmem_cap):
    """Largest legal batch tile whose per-row VMEM cost fits a generation-aware
    budget; prefers >=2 grid steps (v7x megacore) and a lane-dense TB*N."""
    bytes_per_row = 4 * (H0 + 2 * H1 + 2 * num_inputs + 2 * N) + 512
    budget = max(vmem_cap // 4, 8 << 20)      # ~32 MiB on 128 MiB parts, ~16 MiB on v7x
    max_tb = max(8, budget // bytes_per_row)
    cap = min(max_tb, B // 2 if B >= 16 else B)
    cands = [d for d in range(8, int(cap) + 1, 8) if B % d == 0]
    if not cands:
        return B                               # single whole-batch block fallback
    lane_dense = [d for d in cands if (d * N) % 128 == 0]
    return max(lane_dense) if lane_dense else max(cands)


def _pick_chunk(TB, N, target_rows=512):
    """Batch rows per chunk of the flattened (TB*N, H1) expansion stage."""
    limit = max(1, min(TB, target_rows // max(N, 1)))
    best, best_dense = 1, None
    for d in range(1, limit + 1):
        if TB % d == 0:
            best = d
            if (d * N) % 128 == 0:
                best_dense = d                 # lane-dense per-chunk output slab
    return best_dense if best_dense is not None else best


def _vmem_limit_bytes(TB, cb, N, num_inputs, H0, H1, vmem_cap):
    f32, bf = 4, 2
    # Resident inputs (the pipeline still double-buffers constant-index blocks).
    weights = 2 * ((num_inputs * H0 + H0 * H1 + H1 * H1 + H1) * bf
                   + (4 * H0 + 5 * H1 + N * H1) * f32)
    io = 2 * (TB * num_inputs + TB * N) * f32            # double-buffered x / V blocks
    scratch = TB * H1 * f32                              # h2 chunk scratch
    inter = (TB * (H0 + H1) + 4 * cb * N * H1 + N * H1) * f32
    need = weights + io + scratch + inter + (4 << 20)
    # Leave headroom below physical per-core VMEM (esp. v7x's 64 MiB).
    return int(min(max(2 * need, 32 << 20), int(vmem_cap * 0.8)))


def iqn_forward(x, params, tau, *, batch_tile=None):
    B, num_inputs = x.shape
    N = int(tau.shape[0])
    H0 = params["w1"].shape[1]
    H1 = params["w2"].shape[1]

    vmem_cap = _vmem_capacity_bytes()
    TB = batch_tile if batch_tile is not None else _pick_batch_tile(
        B, N, num_inputs, H0, H1, vmem_cap)
    if B % TB != 0 or (TB != B and TB % 8 != 0):
        TB = B                                   # safe fallback: one whole-batch block
    num_tiles = B // TB
    cb = _pick_chunk(TB, N)
    num_chunks = TB // cb

    # Grid-invariant quantile embedding, hoisted out of the kernel (identical on
    # every grid step). NOTE: phi is Linear(1, H1, bias=False), so the mean over
    # the quantile index commutes with phi (exact); invalid if phi gains a bias
    # or nonlinearity.
    quants = jnp.arange(N, dtype=jnp.float32)
    mean_cos = jnp.mean(jnp.cos(jnp.float32(np.pi) * tau * quants),
                        axis=1, keepdims=True)                           # (N, 1)
    rand_feat = jnp.maximum(mean_cos * params["wphi"] + params["phib"], 0.0)  # (N, H1)

    # MXU weight operands in bf16 (halves resident DMA/VMEM); f32 elsewhere.
    bf16 = jnp.bfloat16
    w1 = params["w1"].astype(bf16)
    w2 = params["w2"].astype(bf16)
    w3 = params["w3"].astype(bf16)
    wv = params["wv"].astype(bf16)

    def resident(a):
        nd = a.ndim
        return pl.BlockSpec(a.shape, lambda i, _nd=nd: (0,) * _nd)

    x_spec = pl.BlockSpec((TB, num_inputs), lambda i: (i, 0))
    out_spec = pl.BlockSpec((num_chunks, 1, cb * N), lambda i: (i, 0, 0))
    smem_spec = pl.BlockSpec(memory_space=pltpu.MemorySpace.SMEM)        # bv scalar

    in_specs = [
        x_spec,
        resident(w1), resident(params["b1"]),
        resident(params["g1"]), resident(params["be1"]),
        resident(w2), resident(params["b2"]),
        resident(params["g2"]), resident(params["be2"]),
        resident(rand_feat),
        resident(w3), resident(params["b3"]),
        resident(wv),
        smem_spec,
    ]

    out = pl.pallas_call(
        iqn_kernel,
        out_shape=jax.ShapeDtypeStruct((num_tiles * num_chunks, 1, cb * N),
                                       jnp.float32),
        grid=(num_tiles,),
        in_specs=in_specs,
        out_specs=out_spec,
        scratch_shapes=[pltpu.VMEM((num_chunks, cb, H1), jnp.float32)],
        compiler_params=pltpu.CompilerParams(
            dimension_semantics=("parallel",),
            vmem_limit_bytes=_vmem_limit_bytes(TB, cb, N, num_inputs, H0, H1,
                                               vmem_cap)),
    )(x,
      w1, params["b1"], params["g1"], params["be1"],
      w2, params["b2"], params["g2"], params["be2"],
      rand_feat, w3, params["b3"], wv, params["bv"])

    V = out.reshape(B, N)
    return V, tau


def ref_forward(x, p, tau):
    """Pure-JAX reference following the PyTorch op order exactly, with the same
    precision policy as the kernel (bf16 MXU operands, f32 accumulation)."""
    bf = jnp.bfloat16

    def mm(a, b):
        return jnp.dot(a.astype(bf), b.astype(bf), preferred_element_type=jnp.float32)

    def ln(h, g, b, eps=1e-5):
        mu = h.mean(-1, keepdims=True)
        var = ((h - mu) ** 2).mean(-1, keepdims=True)
        return (h - mu) / jnp.sqrt(var + eps) * g + b

    h = jax.nn.relu(ln(mm(x, p["w1"]) + p["b1"], p["g1"], p["be1"]))
    h = jax.nn.relu(ln(mm(h, p["w2"]) + p["b2"], p["g2"], p["be2"]))
    N = tau.shape[0]
    quants = jnp.arange(N, dtype=jnp.float32)
    cos_trans = jnp.cos(quants * tau * np.pi)[:, :, None]               # (N, N, 1)
    phi_out = cos_trans * p["wphi"].reshape(1, 1, -1)                    # (N, N, H1)
    rand_feat = jax.nn.relu(phi_out.mean(1) + p["phib"])                 # (N, H1)
    x3 = h[:, None, :] * rand_feat[None]                                 # (B, N, H1)
    H1 = x3.shape[-1]
    h3 = jax.nn.relu(mm(x3.reshape(-1, H1), p["w3"]).reshape(x3.shape) + p["b3"])
    V = mm(h3.reshape(-1, H1), p["wv"].T).reshape(h3.shape[0], N) + p["bv"][0, 0]
    return V, tau


def init_params(key, num_inputs, hidden):
    # Deterministic synthetic init (scaled normal in place of torch orthogonal_).
    h0, h1 = hidden
    ks = jax.random.split(key, 6)

    def w(k, shape):
        fan_in = shape[0]
        return (np.sqrt(2.0) / np.sqrt(fan_in)) * jax.random.normal(k, shape, jnp.float32)

    return {
        "w1": w(ks[0], (num_inputs, h0)), "b1": jnp.zeros((1, h0), jnp.float32),
        "g1": jnp.ones((1, h0), jnp.float32), "be1": jnp.zeros((1, h0), jnp.float32),
        "w2": w(ks[1], (h0, h1)), "b2": jnp.zeros((1, h1), jnp.float32),
        "g2": jnp.ones((1, h1), jnp.float32), "be2": jnp.zeros((1, h1), jnp.float32),
        "wphi": w(ks[2], (1, h1)),                    # torch phi.weight (h1,1), stored as row
        "phib": jnp.zeros((1, h1), jnp.float32),
        "w3": w(ks[3], (h1, h1)), "b3": jnp.zeros((1, h1), jnp.float32),
        "wv": w(ks[4], (1, h1)),                      # torch V.weight (1,h1)
        "bv": jnp.zeros((1, 1), jnp.float32),
    }


if __name__ == "__main__":
    hidden_size = [32, 32]
    num_inputs = 16
    num_support = 8

    key = jax.random.PRNGKey(0)
    k_x, k_tau, k_p, k_x2 = jax.random.split(key, 4)

    params = init_params(k_p, num_inputs, hidden_size)
    # TODO(synk): tau is torch.rand(num_support, 1) inside the PyTorch forward;
    # here it is sampled deterministically host-side and passed in.
    tau = jax.random.uniform(k_tau, (num_support, 1), jnp.float32)

    # Small single-block case (TB == B == 2, grid=(1,), one row chunk).
    x = jax.random.normal(k_x, (2, num_inputs), jnp.float32)
    V, tau_out = iqn_forward(x, params, tau)
    V = jax.block_until_ready(V)
    V_ref, _ = ref_forward(x, params, tau)
    assert V.shape == (2, num_support)
    assert tau_out.shape == (num_support, 1)
    np.testing.assert_allclose(np.asarray(V), np.asarray(V_ref), rtol=1e-2, atol=1e-2)

    # Gridded / pipelined / chunked path: B=256 -> TB=128 (2 grid steps for the
    # two v7x TensorCores; still fine on 1-TC chips), 2 row chunks with a
    # lane-dense 512-wide output slab each.
    x2 = jax.random.normal(k_x2, (256, num_inputs), jnp.float32)
    V2, _ = iqn_forward(x2, params, tau)
    V2 = jax.block_until_ready(V2)
    V2_ref, _ = ref_forward(x2, params, tau)
    assert V2.shape == (256, num_support)
    np.testing.assert_allclose(np.asarray(V2), np.asarray(V2_ref), rtol=1e-2, atol=1e-2)

    print("KERNEL_OK")
</pallas_src>

<mosaic_0001>
module attributes {stable_mosaic.version = 11 : i64} {
  func.func @iqn_kernel(%arg0: i32, %arg1: memref<2x16xf32, #tpu.memory_space<vmem>>, %arg2: memref<16x32xbf16, #tpu.memory_space<vmem>>, %arg3: memref<1x32xf32, #tpu.memory_space<vmem>>, %arg4: memref<1x32xf32, #tpu.memory_space<vmem>>, %arg5: memref<1x32xf32, #tpu.memory_space<vmem>>, %arg6: memref<32x32xbf16, #tpu.memory_space<vmem>>, %arg7: memref<1x32xf32, #tpu.memory_space<vmem>>, %arg8: memref<1x32xf32, #tpu.memory_space<vmem>>, %arg9: memref<1x32xf32, #tpu.memory_space<vmem>>, %arg10: memref<8x32xf32, #tpu.memory_space<vmem>>, %arg11: memref<32x32xbf16, #tpu.memory_space<vmem>>, %arg12: memref<1x32xf32, #tpu.memory_space<vmem>>, %arg13: memref<1x32xbf16, #tpu.memory_space<vmem>>, %arg14: memref<1x1xf32, #tpu.memory_space<smem>>, %arg15: memref<1x1x16xf32, #tpu.memory_space<vmem>>, %arg16: memref<1x2x32xf32, #tpu.memory_space<vmem>>) attributes {dimension_semantics = [#tpu.dimension_semantics<parallel>], iteration_bounds = array<i64: 1>, scalar_prefetch = 0 : i64, scratch_operands = 1 : i64, tpu.core_type = #tpu.core_type<tc>, window_params = [{transform_indices = @transform_0, window_bounds = array<i64: 2, 16>}, {pipeline_mode = #tpu.pipeline_mode<synchronous>, transform_indices = @transform_1, window_bounds = array<i64: 16, 32>}, {pipeline_mode = #tpu.pipeline_mode<synchronous>, transform_indices = @transform_2, window_bounds = array<i64: 1, 32>}, {pipeline_mode = #tpu.pipeline_mode<synchronous>, transform_indices = @transform_3, window_bounds = array<i64: 1, 32>}, {pipeline_mode = #tpu.pipeline_mode<synchronous>, transform_indices = @transform_4, window_bounds = array<i64: 1, 32>}, {pipeline_mode = #tpu.pipeline_mode<synchronous>, transform_indices = @transform_5, window_bounds = array<i64: 32, 32>}, {pipeline_mode = #tpu.pipeline_mode<synchronous>, transform_indices = @transform_6, window_bounds = array<i64: 1, 32>}, {pipeline_mode = #tpu.pipeline_mode<synchronous>, transform_indices = @transform_7, window_bounds = array<i64: 1, 32>}, {pipeline_mode = #tpu.pipeline_mode<synchronous>, transform_indices = @transform_8, window_bounds = array<i64: 1, 32>}, {pipeline_mode = #tpu.pipeline_mode<synchronous>, transform_indices = @transform_9, window_bounds = array<i64: 8, 32>}, {pipeline_mode = #tpu.pipeline_mode<synchronous>, transform_indices = @transform_10, window_bounds = array<i64: 32, 32>}, {pipeline_mode = #tpu.pipeline_mode<synchronous>, transform_indices = @transform_11, window_bounds = array<i64: 1, 32>}, {pipeline_mode = #tpu.pipeline_mode<synchronous>, transform_indices = @transform_12, window_bounds = array<i64: 1, 32>}, {transform_indices = @transform_13, window_bounds = array<i64: 1, 1>}, {transform_indices = @transform_14, window_bounds = array<i64: 1, 1, 16>}]} {
    %c0 = arith.constant 0 : index
    %c0_0 = arith.constant 0 : index
    %0 = vector.load %arg1[%c0, %c0_0] : memref<2x16xf32, #tpu.memory_space<vmem>>, vector<2x16xf32>
    %1 = arith.truncf %0 : vector<2x16xf32> to vector<2x16xbf16>
    %c0_1 = arith.constant 0 : index
    %c0_2 = arith.constant 0 : index
    %2 = vector.load %arg2[%c0_1, %c0_2] : memref<16x32xbf16, #tpu.memory_space<vmem>>, vector<16x32xbf16>
    %cst = arith.constant dense<0.000000e+00> : vector<2x32xf32>
    %3 = tpu.matmul %1, %2, %cst {dimension_numbers = #tpu.dot_dimension_numbers<[1], [0], [0], [1], [0, 0, 1, 1], [], []>} : vector<2x16xbf16>, vector<16x32xbf16>, vector<2x32xf32> -> vector<2x32xf32>
    %c0_3 = arith.constant 0 : index
    %c0_4 = arith.constant 0 : index
    %4 = vector.load %arg3[%c0_3, %c0_4] : memref<1x32xf32, #tpu.memory_space<vmem>>, vector<1x32xf32>
    %5 = vector.broadcast %4 : vector<1x32xf32> to vector<2x32xf32>
    %6 = arith.addf %3, %5 : vector<2x32xf32>
    %c0_5 = arith.constant 0 : index
    %c0_6 = arith.constant 0 : index
    %7 = vector.load %arg4[%c0_5, %c0_6] : memref<1x32xf32, #tpu.memory_space<vmem>>, vector<1x32xf32>
    %c0_7 = arith.constant 0 : index
    %c0_8 = arith.constant 0 : index
    %8 = vector.load %arg5[%c0_7, %c0_8] : memref<1x32xf32, #tpu.memory_space<vmem>>, vector<1x32xf32>
    %cst_9 = arith.constant dense<0.000000e+00> : vector<2xf32>
    %9 = vector.multi_reduction <add>, %6, %cst_9 [1] : vector<2x32xf32> to vector<2xf32>
    %10 = vector.shape_cast %9 : vector<2xf32> to vector<2x1xf32>
    %cst_10 = arith.constant 3.200000e+01 : f32
    %11 = vector.broadcast %cst_10 : f32 to vector<2x1xf32>
    %12 = arith.divf %10, %11 : vector<2x1xf32>
    %13 = arith.mulf %6, %6 : vector<2x32xf32>
    %cst_11 = arith.constant dense<0.000000e+00> : vector<2xf32>
    %14 = vector.multi_reduction <add>, %13, %cst_11 [1] : vector<2x32xf32> to vector<2xf32>
    %15 = vector.shape_cast %14 : vector<2xf32> to vector<2x1xf32>
    %cst_12 = arith.constant 3.200000e+01 : f32
    %16 = vector.broadcast %cst_12 : f32 to vector<2x1xf32>
    %17 = arith.divf %15, %16 : vector<2x1xf32>
    %18 = arith.mulf %12, %12 : vector<2x1xf32>
    %19 = arith.subf %17, %18 : vector<2x1xf32>
    %cst_13 = arith.constant 0.000000e+00 : f32
    %20 = vector.broadcast %cst_13 : f32 to vector<2x1xf32>
    %21 = arith.maximumf %19, %20 : vector<2x1xf32>
    %22 = vector.broadcast %12 : vector<2x1xf32> to vector<2x32xf32>
    %23 = arith.subf %6, %22 : vector<2x32xf32>
    %cst_14 = arith.constant 9.99999974E-6 : f32
    %24 = vector.broadcast %cst_14 : f32 to vector<2x1xf32>
    %25 = arith.addf %21, %24 : vector<2x1xf32>
    %26 = math.rsqrt %25 : vector<2x1xf32>
    %27 = vector.broadcast %26 : vector<2x1xf32> to vector<2x32xf32>
    %28 = arith.mulf %23, %27 : vector<2x32xf32>
    %29 = vector.broadcast %7 : vector<1x32xf32> to vector<2x32xf32>
    %30 = arith.mulf %28, %29 : vector<2x32xf32>
    %31 = vector.broadcast %8 : vector<1x32xf32> to vector<2x32xf32>
    %32 = arith.addf %30, %31 : vector<2x32xf32>
    %cst_15 = arith.constant 0.000000e+00 : f32
    %33 = vector.broadcast %cst_15 : f32 to vector<2x32xf32>
    %34 = arith.maximumf %32, %33 : vector<2x32xf32>
    %35 = arith.truncf %34 : vector<2x32xf32> to vector<2x32xbf16>
    %c0_16 = arith.constant 0 : index
    %c0_17 = arith.constant 0 : index
    %36 = vector.load %arg6[%c0_16, %c0_17] : memref<32x32xbf16, #tpu.memory_space<vmem>>, vector<32x32xbf16>
    %cst_18 = arith.constant dense<0.000000e+00> : vector<2x32xf32>
    %37 = tpu.matmul %35, %36, %cst_18 {dimension_numbers = #tpu.dot_dimension_numbers<[1], [0], [0], [1], [0, 0, 1, 1], [], []>} : vector<2x32xbf16>, vector<32x32xbf16>, vector<2x32xf32> -> vector<2x32xf32>
    %c0_19 = arith.constant 0 : index
    %c0_20 = arith.constant 0 : index
    %38 = vector.load %arg7[%c0_19, %c0_20] : memref<1x32xf32, #tpu.memory_space<vmem>>, vector<1x32xf32>
    %39 = vector.broadcast %38 : vector<1x32xf32> to vector<2x32xf32>
    %40 = arith.addf %37, %39 : vector<2x32xf32>
    %c0_21 = arith.constant 0 : index
    %c0_22 = arith.constant 0 : index
    %41 = vector.load %arg8[%c0_21, %c0_22] : memref<1x32xf32, #tpu.memory_space<vmem>>, vector<1x32xf32>
    %c0_23 = arith.constant 0 : index
    %c0_24 = arith.constant 0 : index
    %42 = vector.load %arg9[%c0_23, %c0_24] : memref<1x32xf32, #tpu.memory_space<vmem>>, vector<1x32xf32>
    %cst_25 = arith.constant dense<0.000000e+00> : vector<2xf32>
    %43 = vector.multi_reduction <add>, %40, %cst_25 [1] : vector<2x32xf32> to vector<2xf32>
    %44 = vector.shape_cast %43 : vector<2xf32> to vector<2x1xf32>
    %cst_26 = arith.constant 3.200000e+01 : f32
    %45 = vector.broadcast %cst_26 : f32 to vector<2x1xf32>
    %46 = arith.divf %44, %45 : vector<2x1xf32>
    %47 = arith.mulf %40, %40 : vector<2x32xf32>
    %cst_27 = arith.constant dense<0.000000e+00> : vector<2xf32>
    %48 = vector.multi_reduction <add>, %47, %cst_27 [1] : vector<2x32xf32> to vector<2xf32>
    %49 = vector.shape_cast %48 : vector<2xf32> to vector<2x1xf32>
    %cst_28 = arith.constant 3.200000e+01 : f32
    %50 = vector.broadcast %cst_28 : f32 to vector<2x1xf32>
    %51 = arith.divf %49, %50 : vector<2x1xf32>
    %52 = arith.mulf %46, %46 : vector<2x1xf32>
    %53 = arith.subf %51, %52 : vector<2x1xf32>
    %cst_29 = arith.constant 0.000000e+00 : f32
    %54 = vector.broadcast %cst_29 : f32 to vector<2x1xf32>
    %55 = arith.maximumf %53, %54 : vector<2x1xf32>
    %56 = vector.broadcast %46 : vector<2x1xf32> to vector<2x32xf32>
    %57 = arith.subf %40, %56 : vector<2x32xf32>
    %cst_30 = arith.constant 9.99999974E-6 : f32
    %58 = vector.broadcast %cst_30 : f32 to vector<2x1xf32>
    %59 = arith.addf %55, %58 : vector<2x1xf32>
    %60 = math.rsqrt %59 : vector<2x1xf32>
    %61 = vector.broadcast %60 : vector<2x1xf32> to vector<2x32xf32>
    %62 = arith.mulf %57, %61 : vector<2x32xf32>
    %63 = vector.broadcast %41 : vector<1x32xf32> to vector<2x32xf32>
    %64 = arith.mulf %62, %63 : vector<2x32xf32>
    %65 = vector.broadcast %42 : vector<1x32xf32> to vector<2x32xf32>
    %66 = arith.addf %64, %65 : vector<2x32xf32>
    %cst_31 = arith.constant 0.000000e+00 : f32
    %67 = vector.broadcast %cst_31 : f32 to vector<2x32xf32>
    %68 = arith.maximumf %66, %67 : vector<2x32xf32>
    %69 = vector.shape_cast %68 : vector<2x32xf32> to vector<1x2x32xf32>
    %c0_32 = arith.constant 0 : index
    %c0_33 = arith.constant 0 : index
    %c0_34 = arith.constant 0 : index
    %70 = vector.load %arg16[%c0_32, %c0_33, %c0_34] : memref<1x2x32xf32, #tpu.memory_space<vmem>>, vector<1x2x32xf32>
    tpu.vector_store %arg16[%c0_32, %c0_33, %c0_34], %69 {strides = array<i32>} : memref<1x2x32xf32, #tpu.memory_space<vmem>>, vector<1x2x32xf32>,
    %c0_35 = arith.constant 0 : index
    %c0_36 = arith.constant 0 : index
    %71 = vector.load %arg10[%c0_35, %c0_36] : memref<8x32xf32, #tpu.memory_space<vmem>>, vector<8x32xf32>
    %c0_37 = arith.constant 0 : index
    %c0_38 = arith.constant 0 : index
    %72 = vector.load %arg11[%c0_37, %c0_38] : memref<32x32xbf16, #tpu.memory_space<vmem>>, vector<32x32xbf16>
    %c0_39 = arith.constant 0 : index
    %c0_40 = arith.constant 0 : index
    %73 = vector.load %arg12[%c0_39, %c0_40] : memref<1x32xf32, #tpu.memory_space<vmem>>, vector<1x32xf32>
    %c0_41 = arith.constant 0 : index
    %c0_42 = arith.constant 0 : index
    %74 = vector.load %arg13[%c0_41, %c0_42] : memref<1x32xbf16, #tpu.memory_space<vmem>>, vector<1x32xbf16>
    %c0_43 = arith.constant 0 : index
    %c0_44 = arith.constant 0 : index
    %75 = memref.load %arg14[%c0_43, %c0_44] : memref<1x1xf32, #tpu.memory_space<smem>>
    %c0_45 = arith.constant 0 : index
    %c0_46 = arith.constant 0 : index
    %c0_47 = arith.constant 0 : index
    %76 = vector.load %arg16[%c0_45, %c0_46, %c0_47] : memref<1x2x32xf32, #tpu.memory_space<vmem>>, vector<1x2x32xf32>
    %77 = vector.shape_cast %76 : vector<1x2x32xf32> to vector<2x32xf32>
    %78 = vector.shape_cast %77 : vector<2x32xf32> to vector<2x1x32xf32>
    %79 = vector.shape_cast %71 : vector<8x32xf32> to vector<1x8x32xf32>
    %80 = vector.broadcast %78 : vector<2x1x32xf32> to vector<2x8x32xf32>
    %81 = vector.broadcast %79 : vector<1x8x32xf32> to vector<2x8x32xf32>
    %82 = arith.mulf %80, %81 : vector<2x8x32xf32>
    %83 = vector.shape_cast %82 : vector<2x8x32xf32> to vector<16x32xf32>
    %84 = arith.truncf %83 : vector<16x32xf32> to vector<16x32xbf16>
    %cst_48 = arith.constant dense<0.000000e+00> : vector<16x32xf32>
    %85 = tpu.matmul %84, %72, %cst_48 {dimension_numbers = #tpu.dot_dimension_numbers<[1], [0], [0], [1], [0, 0, 1, 1], [], []>} : vector<16x32xbf16>, vector<32x32xbf16>, vector<16x32xf32> -> vector<16x32xf32>
    %86 = vector.broadcast %73 : vector<1x32xf32> to vector<16x32xf32>
    %87 = arith.addf %85, %86 : vector<16x32xf32>
    %cst_49 = arith.constant 0.000000e+00 : f32
    %88 = vector.broadcast %cst_49 : f32 to vector<16x32xf32>
    %89 = arith.maximumf %87, %88 : vector<16x32xf32>
    %90 = arith.truncf %89 : vector<16x32xf32> to vector<16x32xbf16>
    %cst_50 = arith.constant dense<0.000000e+00> : vector<1x16xf32>
    %91 = tpu.matmul %74, %90, %cst_50 {dimension_numbers = #tpu.dot_dimension_numbers<[1], [1], [0], [0], [0, 0, 1, 0], [], []>} : vector<1x32xbf16>, vector<16x32xbf16>, vector<1x16xf32> -> vector<1x16xf32>
    %92 = vector.broadcast %75 : f32 to vector<1x16xf32>
    %93 = arith.addf %91, %92 : vector<1x16xf32>
    %c0_51 = arith.constant 0 : index
    %c0_52 = arith.constant 0 : index
    %c0_53 = arith.constant 0 : index
    %94 = vector.load %arg15[%c0_51, %c0_52, %c0_53] : memref<1x1x16xf32, #tpu.memory_space<vmem>>, vector<1x1x16xf32>
    %95 = vector.shape_cast %94 : vector<1x1x16xf32> to vector<1x16xf32>
    %96 = vector.shape_cast %93 : vector<1x16xf32> to vector<1x1x16xf32>
    tpu.vector_store %arg15[%c0_51, %c0_52, %c0_53], %96 {strides = array<i32>} : memref<1x1x16xf32, #tpu.memory_space<vmem>>, vector<1x1x16xf32>,
    return
  }
  func.func @transform_0(%arg0: i32) -> (i32, i32) {
    %c0_i32 = arith.constant 0 : i32
    %c0_i32_0 = arith.constant 0 : i32
    return %arg0, %c0_i32 : i32, i32
  }
  func.func @transform_1(%arg0: i32) -> (i32, i32) {
    %c0_i32 = arith.constant 0 : i32
    %c0_i32_0 = arith.constant 0 : i32
    %c0_i32_1 = arith.constant 0 : i32
    return %c0_i32, %c0_i32_0 : i32, i32
  }
  func.func @transform_2(%arg0: i32) -> (i32, i32) {
    %c0_i32 = arith.constant 0 : i32
    %c0_i32_0 = arith.constant 0 : i32
    %c0_i32_1 = arith.constant 0 : i32
    return %c0_i32, %c0_i32_0 : i32, i32
  }
  func.func @transform_3(%arg0: i32) -> (i32, i32) {
    %c0_i32 = arith.constant 0 : i32
    %c0_i32_0 = arith.constant 0 : i32
    %c0_i32_1 = arith.constant 0 : i32
    return %c0_i32, %c0_i32_0 : i32, i32
  }
  func.func @transform_4(%arg0: i32) -> (i32, i32) {
    %c0_i32 = arith.constant 0 : i32
    %c0_i32_0 = arith.constant 0 : i32
    %c0_i32_1 = arith.constant 0 : i32
    return %c0_i32, %c0_i32_0 : i32, i32
  }
  func.func @transform_5(%arg0: i32) -> (i32, i32) {
    %c0_i32 = arith.constant 0 : i32
    %c0_i32_0 = arith.constant 0 : i32
    %c0_i32_1 = arith.constant 0 : i32
    return %c0_i32, %c0_i32_0 : i32, i32
  }
  func.func @transform_6(%arg0: i32) -> (i32, i32) {
    %c0_i32 = arith.constant 0 : i32
    %c0_i32_0 = arith.constant 0 : i32
    %c0_i32_1 = arith.constant 0 : i32
    return %c0_i32, %c0_i32_0 : i32, i32
  }
  func.func @transform_7(%arg0: i32) -> (i32, i32) {
    %c0_i32 = arith.constant 0 : i32
    %c0_i32_0 = arith.constant 0 : i32
    %c0_i32_1 = arith.constant 0 : i32
    return %c0_i32, %c0_i32_0 : i32, i32
  }
  func.func @transform_8(%arg0: i32) -> (i32, i32) {
    %c0_i32 = arith.constant 0 : i32
    %c0_i32_0 = arith.constant 0 : i32
    %c0_i32_1 = arith.constant 0 : i32
    return %c0_i32, %c0_i32_0 : i32, i32
  }
  func.func @transform_9(%arg0: i32) -> (i32, i32) {
    %c0_i32 = arith.constant 0 : i32
    %c0_i32_0 = arith.constant 0 : i32
    %c0_i32_1 = arith.constant 0 : i32
    return %c0_i32, %c0_i32_0 : i32, i32
  }
  func.func @transform_10(%arg0: i32) -> (i32, i32) {
    %c0_i32 = arith.constant 0 : i32
    %c0_i32_0 = arith.constant 0 : i32
    %c0_i32_1 = arith.constant 0 : i32
    return %c0_i32, %c0_i32_0 : i32, i32
  }
  func.func @transform_11(%arg0: i32) -> (i32, i32) {
    %c0_i32 = arith.constant 0 : i32
    %c0_i32_0 = arith.constant 0 : i32
    %c0_i32_1 = arith.constant 0 : i32
    return %c0_i32, %c0_i32_0 : i32, i32
  }
  func.func @transform_12(%arg0: i32) -> (i32, i32) {
    %c0_i32 = arith.constant 0 : i32
    %c0_i32_0 = arith.constant 0 : i32
    %c0_i32_1 = arith.constant 0 : i32
    return %c0_i32, %c0_i32_0 : i32, i32
  }
  func.func @transform_13(%arg0: i32) -> (i32, i32) {
    %c0_i32 = arith.constant 0 : i32
    %c0_i32_0 = arith.constant 0 : i32
    %c0_i32_1 = arith.constant 0 : i32
    return %c0_i32, %c0_i32_0 : i32, i32
  }
  func.func @transform_14(%arg0: i32) -> (i32, i32, i32) {
    %c0_i32 = arith.constant 0 : i32
    %c0_i32_0 = arith.constant 0 : i32
    %c0_i32_1 = arith.constant 0 : i32
    return %arg0, %c0_i32, %c0_i32_0 : i32, i32, i32
  }
}

</mosaic_0001>

<llo_original>
// kernel: tpu_custom_call.1
$region0: #{tpu_custom_call.1}
  #allocation0 [shape = 'u32[]', space=smem, size = 0x4, offset = 0x4, fixed_abs, tag = 'smem constant byte address 0x4 - core index']
  #allocation1 [shape = 'u32[144,128]{1,0:T(1,128)}', space=vmem, size = 0x12000, scoped, tag = 'internal scratch']
  #allocation2 [shape = 'f32[1,2,32]{2,1,0:T(2,128)}', space=vmem, size = 0x400, scoped, tag = 'scratch operand']
  #allocation3 [shape = 'f32[1,1]{1,0:T(1,128)S(6)}', space=smem, size = 0x200, scoped, tag = 'scoped memory for tpu_custom_call.1']
  %s0 = inlined_call_operand.vmem [shape: f32[2,16], index: 0, kind: input, shape index: {}]
  %s1 = inlined_call_operand.hbm [shape: bf16[16,32], index: 1, kind: input, shape index: {}]
  %s2 = inlined_call_operand.hbm [shape: f32[1,32], index: 2, kind: input, shape index: {}]
  %s3 = inlined_call_operand.hbm [shape: f32[1,32], index: 3, kind: input, shape index: {}]
  %s4 = inlined_call_operand.hbm [shape: f32[1,32], index: 4, kind: input, shape index: {}]
  %s5 = inlined_call_operand.vmem [shape: bf16[32,32], index: 5, kind: input, shape index: {}]
  %s6 = inlined_call_operand.hbm [shape: f32[1,32], index: 6, kind: input, shape index: {}]
  %s7 = inlined_call_operand.hbm [shape: f32[1,32], index: 7, kind: input, shape index: {}]
  %s8 = inlined_call_operand.hbm [shape: f32[1,32], index: 8, kind: input, shape index: {}]
  %s9 = inlined_call_operand.hbm [shape: f32[8,32], index: 9, kind: input, shape index: {}]
  %s10 = inlined_call_operand.vmem [shape: bf16[32,32], index: 10, kind: input, shape index: {}]
  %s11 = inlined_call_operand.vmem [shape: f32[1,32], index: 11, kind: input, shape index: {}]
  %s12 = inlined_call_operand.vmem [shape: bf16[1,32], index: 12, kind: input, shape index: {}]
  %s13 = inlined_call_operand.<no memory space> [shape: f32[1,1], index: 13, kind: input, shape index: {}]
  %s14 = inlined_call_operand.hbm [shape: f32[1,1,16], index: 14, kind: output, shape index: {}]
  %s15 = sld [smem:[#allocation0]]
  $region98: #{tpu_custom_call.1} parent=0
    _
  %s17 = ssub.s32 1, %s15
  %s18 = scalar_select 0, %s17, %s15
  %19 = sst [smem:[#allocation3]] %s13
  $region1: #{tpu_custom_call.1} parent=0
    #allocation4 [shape = 'u8[4096]{0}', space=vmem, size = 0x1000, scoped, tag = 'input window, operand 1, single buffered']
    #allocation5 [shape = 's32[1]{0}', space=sflag, size = 0x4, scoped, tag = 'scoped memory for tpu_custom_call.1']
    #allocation6 [shape = 's32[1]{0}', space=sflag, size = 0x4, scoped, tag = 'scoped memory for tpu_custom_call.1']
    #allocation7 [shape = 'u8[512]{0}', space=vmem, size = 0x400, scoped, tag = 'input window, operand 2, single buffered']
    #allocation8 [shape = 's32[1]{0}', space=sflag, size = 0x4, scoped, tag = 'scoped memory for tpu_custom_call.1']
    #allocation9 [shape = 'u8[512]{0}', space=vmem, size = 0x400, scoped, tag = 'input window, operand 3, single buffered']
    #allocation10 [shape = 'u8[512]{0}', space=vmem, size = 0x400, scoped, tag = 'input window, operand 4, single buffered']
    #allocation11 [shape = 's32[1]{0}', space=sflag, size = 0x4, scoped, tag = 'scoped memory for tpu_custom_call.1']
    #allocation12 [shape = 'u8[512]{0}', space=vmem, size = 0x400, scoped, tag = 'input window, operand 6, single buffered']
    #allocation13 [shape = 'u8[512]{0}', space=vmem, size = 0x400, scoped, tag = 'input window, operand 7, single buffered']
    #allocation14 [shape = 's32[1]{0}', space=sflag, size = 0x4, scoped, tag = 'scoped memory for tpu_custom_call.1']
    #allocation15 [shape = 'u8[512]{0}', space=vmem, size = 0x400, scoped, tag = 'input window, operand 8, single buffered']
    #allocation16 [shape = 'u8[4096]{0}', space=vmem, size = 0x1000, scoped, tag = 'input window, operand 9, single buffered']
    #allocation17 [shape = 's32[1]{0}', space=sflag, size = 0x4, scoped, tag = 'scoped memory for tpu_custom_call.1']
    #allocation18 [shape = 'u8[512]{0}', space=vmem, size = 0x400, scoped, tag = 'output window, operand 0, single buffered']
    %20 = vsyncpa [#allocation5], 0
    %21 = vsyncpa [#allocation8], 0
    %22 = vsyncpa [#allocation11], 0
    %23 = vsyncpa [#allocation14], 0
    %24 = vsyncpa [#allocation17], 0
    %25 = vsyncpa [#allocation6], 0
    // Predicated region
    $region2: #{tpu_custom_call.1} parent=1 // pred_check
      _
    $region3: #{tpu_custom_call.1} parent=1 // pred_check_branch
      %27 = sbr.rel (0) target = $region5
    $region4: #{tpu_custom_call.1} parent=1 // pred_region
      _
    $region5: #{tpu_custom_call.1} parent=1 // pred_fallthru
      _
    // Predicated region
    $region6: #{tpu_custom_call.1} parent=1 // pred_check
      _
    $region7: #{tpu_custom_call.1} parent=1 // pred_check_branch
      %29 = sbr.rel (0) target = $region9
    $region8: #{tpu_custom_call.1} parent=1 // pred_region
      %s31 = ssub.s32 128, 128
      %32 = vsyncadd [#allocation5], %s31
      %s33 = sshll.u32 [#allocation4], 4
      %s34 = int_to_ptr.vmem [resolvable:$true] %s33
      %39 = dma.hbm_to_vmem [thread:$0]  %s1, 128, %s34, [#allocation5], 64, 64, 4
    $region9: #{tpu_custom_call.1} parent=1 // pred_fallthru
      _
    // Predicated region
    $region10: #{tpu_custom_call.1} parent=1 // pred_check
      _
    $region11: #{tpu_custom_call.1} parent=1 // pred_check_branch
      %41 = sbr.rel (0) target = $region13
    $region12: #{tpu_custom_call.1} parent=1 // pred_region
      %s43 = ssub.s32 16, 16
      %44 = vsyncadd [#allocation8], %s43
      %s46 = sshll.u32 [#allocation7], 4
      %s47 = int_to_ptr.vmem [resolvable:$true] %s46
      %49 = dma.hbm_to_vmem [thread:$0]  %s2, 16, %s47, [#allocation8]
    $region13: #{tpu_custom_call.1} parent=1 // pred_fallthru
      _
    // Predicated region
    $region14: #{tpu_custom_call.1} parent=1 // pred_check
      _
    $region15: #{tpu_custom_call.1} parent=1 // pred_check_branch
      %51 = sbr.rel (0) target = $region17
    $region16: #{tpu_custom_call.1} parent=1 // pred_region
      %s53 = ssub.s32 16, 16
      %54 = vsyncadd [#allocation8], %s53
      %s56 = sshll.u32 [#allocation9], 4
      %s57 = int_to_ptr.vmem [resolvable:$true] %s56
      %59 = dma.hbm_to_vmem [thread:$0]  %s3, 16, %s57, [#allocation8]
    $region17: #{tpu_custom_call.1} parent=1 // pred_fallthru
      _
    // Predicated region
    $region18: #{tpu_custom_call.1} parent=1 // pred_check
      _
    $region19: #{tpu_custom_call.1} parent=1 // pred_check_branch
      %61 = sbr.rel (0) target = $region21
    $region20: #{tpu_custom_call.1} parent=1 // pred_region
      %s63 = ssub.s32 16, 16
      %64 = vsyncadd [#allocation11], %s63
      %s66 = sshll.u32 [#allocation10], 4
      %s67 = int_to_ptr.vmem [resolvable:$true] %s66
      %69 = dma.hbm_to_vmem [thread:$0]  %s4, 16, %s67, [#allocation11]
    $region21: #{tpu_custom_call.1} parent=1 // pred_fallthru
      _
    // Predicated region
    $region22: #{tpu_custom_call.1} parent=1 // pred_check
      _
    $region23: #{tpu_custom_call.1} parent=1 // pred_check_branch
      %71 = sbr.rel (0) target = $region25
    $region24: #{tpu_custom_call.1} parent=1 // pred_region
      _
    $region25: #{tpu_custom_call.1} parent=1 // pred_fallthru
      _
    // Predicated region
    $region26: #{tpu_custom_call.1} parent=1 // pred_check
      _
    $region27: #{tpu_custom_call.1} parent=1 // pred_check_branch
      %73 = sbr.rel (0) target = $region29
    $region28: #{tpu_custom_call.1} parent=1 // pred_region
      %s75 = ssub.s32 16, 16
      %76 = vsyncadd [#allocation11], %s75
      %s78 = sshll.u32 [#allocation12], 4
      %s79 = int_to_ptr.vmem [resolvable:$true] %s78
      %81 = dma.hbm_to_vmem [thread:$0]  %s6, 16, %s79, [#allocation11]
    $region29: #{tpu_custom_call.1} parent=1 // pred_fallthru
      _
    // Predicated region
    $region30: #{tpu_custom_call.1} parent=1 // pred_check
      _
    $region31: #{tpu_custom_call.1} parent=1 // pred_check_branch
      %83 = sbr.rel (0) target = $region33
    $region32: #{tpu_custom_call.1} parent=1 // pred_region
      %s85 = ssub.s32 16, 16
      %86 = vsyncadd [#allocation14], %s85
      %s88 = sshll.u32 [#allocation13], 4
      %s89 = int_to_ptr.vmem [resolvable:$true] %s88
      %91 = dma.hbm_to_vmem [thread:$0]  %s7, 16, %s89, [#allocation14]
    $region33: #{tpu_custom_call.1} parent=1 // pred_fallthru
      _
    // Predicated region
    $region34: #{tpu_custom_call.1} parent=1 // pred_check
      _
    $region35: #{tpu_custom_call.1} parent=1 // pred_check_branch
      %93 = sbr.rel (0) target = $region37
    $region36: #{tpu_custom_call.1} parent=1 // pred_region
      %s95 = ssub.s32 16, 16
      %96 = vsyncadd [#allocation14], %s95
      %s98 = sshll.u32 [#allocation15], 4
      %s99 = int_to_ptr.vmem [resolvable:$true] %s98
      %101 = dma.hbm_to_vmem [thread:$0]  %s8, 16, %s99, [#allocation14]
    $region37: #{tpu_custom_call.1} parent=1 // pred_fallthru
      _
    // Predicated region
    $region38: #{tpu_custom_call.1} parent=1 // pred_check
      _
    $region39: #{tpu_custom_call.1} parent=1 // pred_check_branch
      %103 = sbr.rel (0) target = $region41
    $region40: #{tpu_custom_call.1} parent=1 // pred_region
      %s105 = ssub.s32 128, 128
      %106 = vsyncadd [#allocation17], %s105
      %s108 = sshll.u32 [#allocation16], 4
      %s109 = int_to_ptr.vmem [resolvable:$true] %s108
      %111 = dma.hbm_to_vmem [thread:$0]  %s9, 128, %s109, [#allocation17]
    $region41: #{tpu_custom_call.1} parent=1 // pred_fallthru
      _
    // Predicated region
    $region42: #{tpu_custom_call.1} parent=1 // pred_check
      _
    $region43: #{tpu_custom_call.1} parent=1 // pred_check_branch
      %113 = sbr.rel (0) target = $region45
    $region44: #{tpu_custom_call.1} parent=1 // pred_region
      _
    $region45: #{tpu_custom_call.1} parent=1 // pred_fallthru
      _
    // Predicated region
    $region46: #{tpu_custom_call.1} parent=1 // pred_check
      _
    $region47: #{tpu_custom_call.1} parent=1 // pred_check_branch
      %115 = sbr.rel (0) target = $region49
    $region48: #{tpu_custom_call.1} parent=1 // pred_region
      _
    $region49: #{tpu_custom_call.1} parent=1 // pred_fallthru
      _
    // Predicated region
    $region50: #{tpu_custom_call.1} parent=1 // pred_check
      _
    $region51: #{tpu_custom_call.1} parent=1 // pred_check_branch
      %117 = sbr.rel (0) target = $region53
    $region52: #{tpu_custom_call.1} parent=1 // pred_region
      _
    $region53: #{tpu_custom_call.1} parent=1 // pred_fallthru
      _
    // Predicated region
    $region54: #{tpu_custom_call.1} parent=1 // pred_check
      _
    $region55: #{tpu_custom_call.1} parent=1 // pred_check_branch
      %119 = sbr.rel (0) target = $region57
    $region56: #{tpu_custom_call.1} parent=1 // pred_region
      _
    $region57: #{tpu_custom_call.1} parent=1 // pred_fallthru
      _
    // Predicated region
    $region58: #{tpu_custom_call.1} parent=1 // pred_check
      _
    $region59: #{tpu_custom_call.1} parent=1 // pred_check_branch
      %121 = sbr.rel (0) target = $region61
    $region60: #{tpu_custom_call.1} parent=1 // pred_region
      %122 = dma.done [#allocation5], 128
    $region61: #{tpu_custom_call.1} parent=1 // pred_fallthru
      _
    // Predicated region
    $region62: #{tpu_custom_call.1} parent=1 // pred_check
      _
    $region63: #{tpu_custom_call.1} parent=1 // pred_check_branch
      %124 = sbr.rel (0) target = $region65
    $region64: #{tpu_custom_call.1} parent=1 // pred_region
      %125 = dma.done [#allocation8], 16
    $region65: #{tpu_custom_call.1} parent=1 // pred_fallthru
      _
    // Predicated region
    $region66: #{tpu_custom_call.1} parent=1 // pred_check
      _
    $region67: #{tpu_custom_call.1} parent=1 // pred_check_branch
      %127 = sbr.rel (0) target = $region69
    $region68: #{tpu_custom_call.1} parent=1 // pred_region
      %128 = dma.done [#allocation8], 16
    $region69: #{tpu_custom_call.1} parent=1 // pred_fallthru
      _
    // Predicated region
    $region70: #{tpu_custom_call.1} parent=1 // pred_check
      _
    $region71: #{tpu_custom_call.1} parent=1 // pred_check_branch
      %130 = sbr.rel (0) target = $region73
    $region72: #{tpu_custom_call.1} parent=1 // pred_region
      %131 = dma.done [#allocation11], 16
    $region73: #{tpu_custom_call.1} parent=1 // pred_fallthru
      _
    // Predicated region
    $region74: #{tpu_custom_call.1} parent=1 // pred_check
      _
    $region75: #{tpu_custom_call.1} parent=1 // pred_check_branch
      %133 = sbr.rel (0) target = $region77
    $region76: #{tpu_custom_call.1} parent=1 // pred_region
      %134 = dma.done [#allocation11], 16
    $region77: #{tpu_custom_call.1} parent=1 // pred_fallthru
      _
    // Predicated region
    $region78: #{tpu_custom_call.1} parent=1 // pred_check
      _
    $region79: #{tpu_custom_call.1} parent=1 // pred_check_branch
      %136 = sbr.rel (0) target = $region81
    $region80: #{tpu_custom_call.1} parent=1 // pred_region
      %137 = dma.done [#allocation14], 16
    $region81: #{tpu_custom_call.1} parent=1 // pred_fallthru
      _
    // Predicated region
    $region82: #{tpu_custom_call.1} parent=1 // pred_check
      _
    $region83: #{tpu_custom_call.1} parent=1 // pred_check_branch
      %139 = sbr.rel (0) target = $region85
    $region84: #{tpu_custom_call.1} parent=1 // pred_region
      %140 = dma.done [#allocation14], 16
    $region85: #{tpu_custom_call.1} parent=1 // pred_fallthru
      _
    // Predicated region
    $region86: #{tpu_custom_call.1} parent=1 // pred_check
      _
    $region87: #{tpu_custom_call.1} parent=1 // pred_check_branch
      %142 = sbr.rel (0) target = $region89
    $region88: #{tpu_custom_call.1} parent=1 // pred_region
      %143 = dma.done [#allocation17], 128
    $region89: #{tpu_custom_call.1} parent=1 // pred_fallthru
      _
    %v145 = vld [vmem:[%s0] sm:$0x3]
    %v146 = vpack.c.bf16 %v145, %v145
    %v147 = vld [vmem:[#allocation4] sm:$0xf]
    %v148 = vld [vmem:[#allocation4 + $0x4] sm:$0xf]
    %v149 = vld [vmem:[#allocation7] sm:$0x1]
    %v151 = vlaneseq
    %v152 = vshrl.u32 %v151, 7
    %v153 = vsub.s32 0, %v152
    %v154 = vrot.slane %v149, %v153
    %v158 = vunpack.c.l.b16 %v147
    %v159 = vunpack.c.l.b16 %v148
    %v160 = vpack.c.b16 %v159, %v158
    %vm162 = vcmask 130048
    %v164 = vsel %vm162, %v146, 0
    %166 = vmatprep.subr.bf16.mxu0 0
    %167 = vmatpush1.bf16.msra.mxu0 %v160
    %168 = vmatprep.subr.bf16.mxu0 0
    %169 = vmatpush1.bf16.msra.mxu0 0
    %170 = vmatprep.subr.bf16.mxu0 0
    %171 = vmatpush1.bf16.msra.mxu0 0
    %172 = vmatprep.subr.bf16.mxu0 0
    %173 = vmatpush1.bf16.msra.mxu0 0
    %174 = vmatprep.subr.bf16.mxu0 0
    %175 = vmatpush1.bf16.msra.mxu0 0
    %176 = vmatprep.subr.bf16.mxu0 0
    %177 = vmatpush1.bf16.msra.mxu0 0
    %178 = vmatprep.subr.bf16.mxu0 0
    %179 = vmatpush1.bf16.msra.mxu0 0
    %180 = vmatprep.subr.bf16.mxu0 0
    %181 = vmatpush1.bf16.msra.mxu0 0
    %182 = vmatprep.subr.bf16.mxu0 0
    %183 = vmatpush1.bf16.msra.mxu0 0
    %184 = vmatprep.subr.bf16.mxu0 0
    %185 = vmatpush1.bf16.msra.mxu0 0
    %186 = vmatprep.subr.bf16.mxu0 0
    %187 = vmatpush1.bf16.msra.mxu0 0
    %188 = vmatprep.subr.bf16.mxu0 0
    %189 = vmatpush1.bf16.msra.mxu0 0
    %190 = vmatprep.subr.bf16.mxu0 0
    %191 = vmatpush1.bf16.msra.mxu0 0
    %192 = vmatprep.subr.bf16.mxu0 0
    %193 = vmatpush1.bf16.msra.mxu0 0
    %194 = vmatprep.subr.bf16.mxu0 0
    %195 = vmatpush1.bf16.msra.mxu0 0
    %196 = vmatprep.subr.bf16.mxu0 0
    %197 = vmatpush1.bf16.msra.mxu0 0
    %198 = vmatprep.mubr.bf16.mxu0 0
    %199 = vmatmul.mubr.bf16.gmra.mrb[0].mxu0 %v164
    %v200 = vpop.f32.mrb[0].mxu0
    %v201 = vadd.f32 %v154, %v200
    %v202 = vpop.f32.mrb[0].mxu0
    %v203 = vpop.f32.mrb[0].mxu0
    %v204 = vpop.f32.mrb[0].mxu0
    %205 = vdwg.mxu0
    %v206 = vld [vmem:[#allocation9] sm:$0x1]
    %v207 = vld [vmem:[#allocation10] sm:$0x1]
    %vm208 = vcmask 254976
    %v209 = vsel %vm208, %v201, 0.0
    %210 = vadd.xlane.f32.xlu0 %v209
    %v211 = vpop.xlane.xlu0 %210
    %v212 = vrcp.pop 32.0
    %v213 = vmul.f32 %v211, %v212
    %v214 = vmul.f32 %v201, %v201
    %v215 = vsel %vm208, %v214, 0.0
    %216 = vadd.xlane.f32.xlu0 %v215
    %v217 = vpop.xlane.xlu0 %216
    %v218 = vmul.f32 %v217, %v212
    %v219 = vmul.f32 %v213, %v213
    %v220 = vsub.f32 %v218, %v219
    %v221 = vmax.f32 %v220, 0.0
    %v222 = vsub.f32 %v201, %v213
    %v223 = vadd.f32 %v221, 1e-05
    %v224 = vrsqrt.pop %v223
    %v225 = vmul.f32 %v222, %v224
    %v227 = vlaneseq
    %v228 = vshrl.u32 %v227, 7
    %v229 = vsub.s32 0, %v228
    %v230 = vrot.slane %v206, %v229
    %v232 = vmul.f32 %v225, %v230
    %v234 = vlaneseq
    %v235 = vshrl.u32 %v234, 7
    %v236 = vsub.s32 0, %v235
    %v237 = vrot.slane %v207, %v236
    %v239 = vadd.f32 %v232, %v237
    %v240 = vmax.f32 %v239, 0.0
    %v241 = vpack.c.bf16 %v240, %v240
    %v242 = vld [vmem:[%s5] sm:$0xf]
    %v243 = vld [vmem:[%s5 + $0x4] sm:$0xf]
    %v244 = vld [vmem:[%s5 + $0x8] sm:$0xf]
    %v245 = vld [vmem:[%s5 + $0xc] sm:$0xf]
    %v246 = vld [vmem:[#allocation12] sm:$0x1]
    %v248 = vlaneseq
    %v249 = vshrl.u32 %v248, 7
    %v250 = vsub.s32 0, %v249
    %v251 = vrot.slane %v246, %v250
    %v257 = vunpack.c.l.b16 %v242
    %v258 = vunpack.c.l.b16 %v243
    %v259 = vunpack.c.l.b16 %v244
    %v260 = vunpack.c.l.b16 %v245
    %v261 = vpack.c.b16 %v258, %v257
    %v262 = vpack.c.b16 %v260, %v259
    %vm265 = vcmask 261120
    %v267 = vsel %vm265, %v241, 0
    %269 = vmatprep.subr.bf16.mxu0 0
    %270 = vmatpush1.bf16.msra.mxu0 %v261
    %271 = vmatprep.subr.bf16.mxu0 0
    %272 = vmatpush1.bf16.msra.mxu0 %v262
    %273 = vmatprep.subr.bf16.mxu0 0
    %274 = vmatpush1.bf16.msra.mxu0 0
    %275 = vmatprep.subr.bf16.mxu0 0
    %276 = vmatpush1.bf16.msra.mxu0 0
    %277 = vmatprep.subr.bf16.mxu0 0
    %278 = vmatpush1.bf16.msra.mxu0 0
    %279 = vmatprep.subr.bf16.mxu0 0
    %280 = vmatpush1.bf16.msra.mxu0 0
    %281 = vmatprep.subr.bf16.mxu0 0
    %282 = vmatpush1.bf16.msra.mxu0 0
    %283 = vmatprep.subr.bf16.mxu0 0
    %284 = vmatpush1.bf16.msra.mxu0 0
    %285 = vmatprep.subr.bf16.mxu0 0
    %286 = vmatpush1.bf16.msra.mxu0 0
    %287 = vmatprep.subr.bf16.mxu0 0
    %288 = vmatpush1.bf16.msra.mxu0 0
    %289 = vmatprep.subr.bf16.mxu0 0
    %290 = vmatpush1.bf16.msra.mxu0 0
    %291 = vmatprep.subr.bf16.mxu0 0
    %292 = vmatpush1.bf16.msra.mxu0 0
    %293 = vmatprep.subr.bf16.mxu0 0
    %294 = vmatpush1.bf16.msra.mxu0 0
    %295 = vmatprep.subr.bf16.mxu0 0
    %296 = vmatpush1.bf16.msra.mxu0 0
    %297 = vmatprep.subr.bf16.mxu0 0
    %298 = vmatpush1.bf16.msra.mxu0 0
    %299 = vmatprep.subr.bf16.mxu0 0
    %300 = vmatpush1.bf16.msra.mxu0 0
    %301 = vmatprep.mubr.bf16.mxu0 0
    %302 = vmatmul.mubr.bf16.gmra.mrb[0].mxu0 %v267
    %v303 = vpop.f32.mrb[0].mxu0
    %v304 = vadd.f32 %v251, %v303
    %v305 = vpop.f32.mrb[0].mxu0
    %v306 = vpop.f32.mrb[0].mxu0
    %v307 = vpop.f32.mrb[0].mxu0
    %308 = vdwg.mxu0
    %v309 = vld [vmem:[#allocation13] sm:$0x1]
    %v310 = vld [vmem:[#allocation15] sm:$0x1]
    %v311 = vsel %vm208, %v304, 0.0
    %312 = vadd.xlane.f32.xlu0 %v311
    %v313 = vpop.xlane.xlu0 %312
    %v314 = vmul.f32 %v313, %v212
    %v315 = vmul.f32 %v304, %v304
    %v316 = vsel %vm208, %v315, 0.0
    %317 = vadd.xlane.f32.xlu0 %v316
    %v318 = vpop.xlane.xlu0 %317
    %v319 = vmul.f32 %v318, %v212
    %v320 = vmul.f32 %v314, %v314
    %v321 = vsub.f32 %v319, %v320
    %v322 = vmax.f32 %v321, 0.0
    %v323 = vsub.f32 %v304, %v314
    %v324 = vadd.f32 %v322, 1e-05
    %v325 = vrsqrt.pop %v324
    %v326 = vmul.f32 %v323, %v325
    %v328 = vlaneseq
    %v329 = vshrl.u32 %v328, 7
    %v330 = vsub.s32 0, %v329
    %v331 = vrot.slane %v309, %v330
    %v333 = vmul.f32 %v326, %v331
    %v335 = vlaneseq
    %v336 = vshrl.u32 %v335, 7
    %v337 = vsub.s32 0, %v336
    %v338 = vrot.slane %v310, %v337
    %v340 = vadd.f32 %v333, %v338
    %v341 = vmax.f32 %v340, 0.0
    %342 = vst.msk [vmem:[#allocation2] sm:$0x3] %vm208, %v341
    %v343 = vld [vmem:[#allocation16] sm:$0xff]
    %v344 = vld [vmem:[%s10] sm:$0xf]
    %v345 = vld [vmem:[%s10 + $0x4] sm:$0xf]
    %v346 = vld [vmem:[%s10 + $0x8] sm:$0xf]
    %v347 = vld [vmem:[%s10 + $0xc] sm:$0xf]
    %v348 = vld [vmem:[%s11] sm:$0x1]
    %v349 = vld [vmem:[%s12] sm:$0x1]
    %s350 = sld [smem:[#allocation3]]
    %v351 = vld [vmem:[#allocation2] sm:$0x3]
    %v354 = vunpack.c.l.s4 1966171168
    %v355 = vunpack.c.0.s8 %v354
    %v356 = vlaneseq
    %v357 = vshrl.u32 %v356, 7
    %v358 = vsub.s32 %v355, %v357
    %v359 = vrot.slane %v351, %v358
    %v360 = vcombine.high %v359, %v359
    %v362 = vunpack.c.l.s4 1966171168
    %v363 = vunpack.c.0.s8 %v362
    %v364 = vlaneseq
    %v365 = vshrl.u32 %v364, 7
    %v366 = vsub.s32 %v363, %v365
    %v367 = vrot.slane %v359, %v366
    %v369 = vunpack.c.l.s4 1966171168
    %v370 = vunpack.c.0.s8 %v369
    %v371 = vlaneseq
    %v372 = vshrl.u32 %v371, 7
    %v373 = vsub.s32 %v370, %v372
    %v374 = vrot.slane %v360, %v373
    %v375 = vlaneseq
    %v376 = vshrl.u32 %v375, 7
    %v377 = vsub.s32 0, %v376
    %v378 = vrot.slane %v367, %v377
    %v379 = vlaneseq
    %v380 = vshrl.u32 %v379, 7
    %v381 = vsub.s32 0, %v380
    %v382 = vrot.slane %v374, %v381
    %v385 = vmul.f32 %v378, %v343
    %v386 = vmul.f32 %v382, %v343
    %v387 = vpack.c.bf16 %v386, %v385
    %v389 = vlaneseq
    %v390 = vshrl.u32 %v389, 7
    %v391 = vsub.s32 0, %v390
    %v392 = vrot.slane %v348, %v391
    %v398 = vunpack.c.l.b16 %v344
    %v399 = vunpack.c.l.b16 %v345
    %v400 = vunpack.c.l.b16 %v346
    %v401 = vunpack.c.l.b16 %v347
    %v402 = vpack.c.b16 %v399, %v398
    %v403 = vpack.c.b16 %v401, %v400
    %v407 = vsel %vm265, %v387, 0
    %409 = vmatprep.subr.bf16.mxu0 0
    %410 = vmatpush1.bf16.msra.mxu0 %v402
    %411 = vmatprep.subr.bf16.mxu0 0
    %412 = vmatpush1.bf16.msra.mxu0 %v403
    %413 = vmatprep.subr.bf16.mxu0 0
    %414 = vmatpush1.bf16.msra.mxu0 0
    %415 = vmatprep.subr.bf16.mxu0 0
    %416 = vmatpush1.bf16.msra.mxu0 0
    %417 = vmatprep.subr.bf16.mxu0 0
    %418 = vmatpush1.bf16.msra.mxu0 0
    %419 = vmatprep.subr.bf16.mxu0 0
    %420 = vmatpush1.bf16.msra.mxu0 0
    %421 = vmatprep.subr.bf16.mxu0 0
    %422 = vmatpush1.bf16.msra.mxu0 0
    %423 = vmatprep.subr.bf16.mxu0 0
    %424 = vmatpush1.bf16.msra.mxu0 0
    %425 = vmatprep.subr.bf16.mxu0 0
    %426 = vmatpush1.bf16.msra.mxu0 0
    %427 = vmatprep.subr.bf16.mxu0 0
    %428 = vmatpush1.bf16.msra.mxu0 0
    %429 = vmatprep.subr.bf16.mxu0 0
    %430 = vmatpush1.bf16.msra.mxu0 0
    %431 = vmatprep.subr.bf16.mxu0 0
    %432 = vmatpush1.bf16.msra.mxu0 0
    %433 = vmatprep.subr.bf16.mxu0 0
    %434 = vmatpush1.bf16.msra.mxu0 0
    %435 = vmatprep.subr.bf16.mxu0 0
    %436 = vmatpush1.bf16.msra.mxu0 0
    %437 = vmatprep.subr.bf16.mxu0 0
    %438 = vmatpush1.bf16.msra.mxu0 0
    %439 = vmatprep.subr.bf16.mxu0 0
    %440 = vmatpush1.bf16.msra.mxu0 0
    %441 = vmatprep.mubr.bf16.mxu0 0
    %442 = vmatmul.mubr.bf16.gmra.mrb[0].mxu0 %v407
    %v443 = vpop.f32.mrb[0].mxu0
    %v444 = vadd.f32 %v392, %v443
    %v445 = vpop.f32.mrb[0].mxu0
    %v446 = vpop.f32.mrb[0].mxu0
    %v447 = vadd.f32 %v392, %v446
    %v448 = vpop.f32.mrb[0].mxu0
    %449 = vdwg.mxu0
    %v450 = vmax.f32 %v444, 0.0
    %v451 = vmax.f32 %v447, 0.0
    %v452 = vpack.c.bf16 %v451, %v450
    %v453 = vstv %s350
    %v455 = vsel %vm265, %v349, 0
    %v458 = vsel %vm265, %v452, 0
    %460 = vmatprep.subr.bf16.mxu0 0
    %461 = vmatpush1.bf16.xpose.msra.mxu0 %v458
    %462 = vmatprep.subr.bf16.mxu0 0
    %463 = vmatpush1.bf16.xpose.msra.mxu0 0
    %464 = vmatprep.subr.bf16.mxu0 0
    %465 = vmatpush1.bf16.xpose.msra.mxu0 0
    %466 = vmatprep.subr.bf16.mxu0 0
    %467 = vmatpush1.bf16.xpose.msra.mxu0 0
    %468 = vmatprep.subr.bf16.mxu0 0
    %469 = vmatpush1.bf16.xpose.msra.mxu0 0
    %470 = vmatprep.subr.bf16.mxu0 0
    %471 = vmatpush1.bf16.xpose.msra.mxu0 0
    %472 = vmatprep.subr.bf16.mxu0 0
    %473 = vmatpush1.bf16.xpose.msra.mxu0 0
    %474 = vmatprep.subr.bf16.mxu0 0
    %475 = vmatpush1.bf16.xpose.msra.mxu0 0
    %476 = vmatprep.subr.bf16.mxu0 0
    %477 = vmatpush1.bf16.xpose.msra.mxu0 0
    %478 = vmatprep.subr.bf16.mxu0 0
    %479 = vmatpush1.bf16.xpose.msra.mxu0 0
    %480 = vmatprep.subr.bf16.mxu0 0
    %481 = vmatpush1.bf16.xpose.msra.mxu0 0
    %482 = vmatprep.subr.bf16.mxu0 0
    %483 = vmatpush1.bf16.xpose.msra.mxu0 0
    %484 = vmatprep.subr.bf16.mxu0 0
    %485 = vmatpush1.bf16.xpose.msra.mxu0 0
    %486 = vmatprep.subr.bf16.mxu0 0
    %487 = vmatpush1.bf16.xpose.msra.mxu0 0
    %488 = vmatprep.subr.bf16.mxu0 0
    %489 = vmatpush1.bf16.xpose.msra.mxu0 0
    %490 = vmatprep.subr.bf16.mxu0 0
    %491 = vmatpush1.bf16.xpose.msra.mxu0 0
    %492 = vmatprep.mubr.bf16.mxu0 0
    %493 = vmatmul.mubr.bf16.gmra.mrb[0].mxu0 %v455
    %v494 = vpop.f32.mrb[0].mxu0
    %v495 = vadd.f32 %v453, %v494
    %v496 = vpop.f32.mrb[0].mxu0
    %v497 = vpop.f32.mrb[0].mxu0
    %v498 = vpop.f32.mrb[0].mxu0
    %499 = vdwg.mxu0
    %vm500 = vcmask 122880
    %501 = vst.msk [vmem:[#allocation18] sm:$0x1] %vm500, %v495
    // Predicated region
    $region90: #{tpu_custom_call.1} parent=1 // pred_check
      _
    $region91: #{tpu_custom_call.1} parent=1 // pred_check_branch
      %503 = sbr.rel (0) target = $region93
    $region92: #{tpu_custom_call.1} parent=1 // pred_region
      %s505 = ssub.s32 16, 16
      %506 = vsyncadd [#allocation6], %s505
      %s508 = sshll.u32 [#allocation18], 4
      %s509 = int_to_ptr.vmem [resolvable:$true] %s508
      %511 = dma.vmem_to_hbm [thread:$0]  %s509, 16, %s14, [#allocation6]
    $region93: #{tpu_custom_call.1} parent=1 // pred_fallthru
      _
    // Predicated region
    $region94: #{tpu_custom_call.1} parent=1 // pred_check
      _
    $region95: #{tpu_custom_call.1} parent=1 // pred_check_branch
      %513 = sbr.rel (0) target = $region97
    $region96: #{tpu_custom_call.1} parent=1 // pred_region
      %514 = dma.done [#allocation6], 16
    $region97: #{tpu_custom_call.1} parent=1 // pred_fallthru
      _
    %515 = vsyncpa [#allocation5], 1
    %516 = vsyncpa [#allocation8], 1
    %517 = vsyncpa [#allocation11], 1
    %518 = vsyncpa [#allocation14], 1
    %519 = vsyncpa [#allocation17], 1
    %520 = vsyncpa [#allocation6], 1

</llo_original>
